<compile_context>
chip_gen: v5e
topology: v5e:2x2
jax: 0.10.0
libtpu: 0.0.40
codegen_flags: <defaults>
</compile_context>

<pallas_src>
import functools
import math

import jax
import jax.numpy as jnp
from jax import lax
from jax.experimental import pallas as pl
from jax.experimental.pallas import tpu as pltpu


def _flash_qkv_kernel(q_ref, k_ref, v_ref, o_ref,
                      q_sc, m_sc, l_sc, acc_sc, *,
                      scale, kv_tile, valid_len, need_mask, mxu_dtype):
    kv = pl.program_id(3)

    @pl.when(kv == 0)
    def _init():
        # Hoisted across the KV loop: softmax scale + MXU-dtype cast of Q.
        q_sc[...] = (q_ref[...].astype(jnp.float32) * scale).astype(q_sc.dtype)
        m_sc[...] = jnp.full_like(m_sc, -jnp.inf)
        l_sc[...] = jnp.zeros_like(l_sc)
        acc_sc[...] = jnp.zeros_like(acc_sc)

    q = q_sc[...]                            # (hb, C, TQ), mxu_dtype, pre-scaled
    k = k_ref[...].astype(mxu_dtype)         # (hb, C, TKV)
    v = v_ref[...]                           # (hb, C, TKV), native dtype

    # s[b, s, t] = sum_c k[b, c, s] * q[b, c, t]  -> (hb, TKV, TQ), f32 on MXU.
    s = lax.dot_general(k, q, (((1,), (1,)), ((0,), (0,))),
                        preferred_element_type=jnp.float32)

    if need_mask:
        # Only emitted when the KV axis has a ragged tail.  Tiny (1,tkv,1) /
        # (1,1,tkv) index vectors; where-selects scrub any NaN/Inf garbage that
        # the out-of-bounds part of an edge block may contain.  Mask is applied
        # in f32, before any low-precision cast.
        base = kv * kv_tile
        ids_s = base + lax.broadcasted_iota(jnp.int32, (1, kv_tile, 1), 1)
        s = jnp.where(ids_s < valid_len, s, -1e30)
        ids_v = base + lax.broadcasted_iota(jnp.int32, (1, 1, kv_tile), 2)
        v = jnp.where(ids_v < valid_len, v, jnp.zeros_like(v))

    v = v.astype(mxu_dtype)

    # Online softmax over the KV (sublane) axis; carries live in (hb, 1, TQ).
    m_prev = m_sc[...]
    m_new = jnp.maximum(m_prev, jnp.max(s, axis=1, keepdims=True))
    alpha = jnp.exp(m_prev - m_new)
    p = jnp.exp(s - m_new)                                   # (hb, TKV, TQ) f32
    l_sc[...] = alpha * l_sc[...] + jnp.sum(p, axis=1, keepdims=True)

    # a[b, c, t] = sum_s v[b, c, s] * p[b, s, t]  -> (hb, C, TQ), f32 accum.
    pv = lax.dot_general(v, p.astype(mxu_dtype), (((2,), (1,)), ((0,), (0,))),
                         preferred_element_type=jnp.float32)
    acc_sc[...] = alpha * acc_sc[...] + pv
    m_sc[...] = m_new

    @pl.when(kv == pl.num_programs(3) - 1)
    def _finalize():
        # Exact reciprocal: runs once per q tile on a (hb,1,TQ) vector — free,
        # and keeps tight parity with the PyTorch reference.
        inv_l = pl.reciprocal(l_sc[...], approx=False)
        o_ref[...] = (acc_sc[...] * inv_l).astype(o_ref.dtype)


def _divisor_leq(n: int, cap: int) -> int:
    d = max(1, min(cap, n))
    while n % d:
        d -= 1
    return d


def qkv_attention(qkv: jax.Array, n_heads: int, *,
                  q_block: int | None = None, kv_block: int | None = None,
                  head_block: int = 4, use_bf16_matmul: bool = True) -> jax.Array:
    """Pallas equivalent of QKVAttention.forward.

    :param qkv: [N, 3*H*C, T]
    :return:    [N, H*C, T]
    """
    bs, width, length = qkv.shape
    assert width % (3 * n_heads) == 0
    ch = width // (3 * n_heads)
    # PyTorch scales q and k each by ch**-0.25; fold both into q once.
    scale = 1.0 / math.sqrt(ch)

    # [N, 3*H*C, T] -> [N, 3, H, C, T]: contiguous reshape, no HBM copy.
    qkv5 = qkv.reshape(bs, 3, n_heads, ch, length)

    in_dtype = qkv.dtype
    if use_bf16_matmul and in_dtype == jnp.float32:
        mxu_dtype = jnp.bfloat16          # fast MXU path on v6e / v7x
    else:
        mxu_dtype = in_dtype

    # Generation-aware sizing (v7x: 64 MiB VMEM / 2 TCs; v5e/v6e: 128 MiB).
    try:
        vmem_cap = int(pltpu.get_tpu_info().vmem_capacity_bytes)
    except Exception:
        vmem_cap = 64 * 1024 * 1024
    big_vmem = vmem_cap >= 100 * 1024 * 1024
    if q_block is None:
        q_block = 512 if big_vmem else 256   # larger q tile on v5e/v6e cuts KV re-reads
    if kv_block is None:
        kv_block = 512

    # Lane-dense tiles (multiple of 128) or full-dim blocks; ragged tails are
    # handled by Pallas partial edge blocks + in-kernel masking (no jnp.pad).
    tq = q_block if length > q_block else length
    tkv = kv_block if length > kv_block else length
    nq = pl.cdiv(length, tq)
    nkv = pl.cdiv(length, tkv)
    need_mask = (length % tkv) != 0

    # Heads per grid step: largest divisor of H not exceeding head_block, shrunk
    # so the per-step footprint stays modest and there are >= 2 "parallel" grid
    # steps (keeps both v7x TensorCores busy).
    hb = _divisor_leq(n_heads, head_block)
    itemsize = jnp.dtype(in_dtype).itemsize
    while hb > 1 and hb * ch * (tq + 2 * tkv) * itemsize > 8 * 1024 * 1024:
        hb = _divisor_leq(n_heads, hb - 1)
    while hb > 1 and bs * (n_heads // hb) * nq < 2:
        hb = _divisor_leq(n_heads, hb - 1)

    grid = (bs, n_heads // hb, nq, nkv)

    q_spec = pl.BlockSpec((None, None, hb, ch, tq),
                          lambda n, h, qi, ki: (n, 0, h, 0, qi))
    k_spec = pl.BlockSpec((None, None, hb, ch, tkv),
                          lambda n, h, qi, ki: (n, 1, h, 0, ki))
    v_spec = pl.BlockSpec((None, None, hb, ch, tkv),
                          lambda n, h, qi, ki: (n, 2, h, 0, ki))
    o_spec = pl.BlockSpec((None, hb, ch, tq),
                          lambda n, h, qi, ki: (n, h, 0, qi))

    kernel = functools.partial(
        _flash_qkv_kernel, scale=scale, kv_tile=tkv,
        valid_len=length, need_mask=need_mask, mxu_dtype=mxu_dtype)

    # Raise v5e's 16 MiB scoped-VMEM default; stay comfortably inside v7x's 64 MiB.
    vmem_limit = max(32 * 1024 * 1024, min(int(0.75 * vmem_cap), 96 * 1024 * 1024))

    out = pl.pallas_call(
        kernel,
        out_shape=jax.ShapeDtypeStruct((bs, n_heads, ch, length), in_dtype),
        grid_spec=pltpu.PrefetchScalarGridSpec(
            num_scalar_prefetch=0,
            grid=grid,
            in_specs=[q_spec, k_spec, v_spec],
            out_specs=o_spec,
            scratch_shapes=[
                pltpu.VMEM((hb, ch, tq), mxu_dtype),    # scaled q (hoisted over KV)
                pltpu.VMEM((hb, 1, tq), jnp.float32),   # running max
                pltpu.VMEM((hb, 1, tq), jnp.float32),   # running sum
                pltpu.VMEM((hb, ch, tq), jnp.float32),  # output accumulator
            ],
        ),
        compiler_params=pltpu.CompilerParams(
            dimension_semantics=("parallel", "parallel", "parallel", "arbitrary"),
            vmem_limit_bytes=vmem_limit,
        ),
    )(qkv5, qkv5, qkv5)

    # [N, H, C, T] -> [N, H*C, T]: contiguous, free.
    return out.reshape(bs, n_heads * ch, length)


def _reference(qkv: jax.Array, n_heads: int) -> jax.Array:
    """Pure-JAX reference mirroring the PyTorch forward."""
    bs, width, length = qkv.shape
    ch = width // (3 * n_heads)
    q, k, v = jnp.split(qkv, 3, axis=1)
    scale = 1.0 / math.sqrt(math.sqrt(ch))
    q = (q.reshape(bs * n_heads, ch, length) * scale).astype(jnp.float32)
    k = (k.reshape(bs * n_heads, ch, length) * scale).astype(jnp.float32)
    v = v.reshape(bs * n_heads, ch, length).astype(jnp.float32)
    w = jax.nn.softmax(jnp.einsum("bct,bcs->bts", q, k), axis=-1)
    a = jnp.einsum("bts,bcs->bct", w, v)
    return a.reshape(bs, -1, length).astype(qkv.dtype)


# TODO(synk): count_flops_attn is a host-side thop profiling hook; it has no kernel equivalent.

if __name__ == "__main__":
    # Small deterministic example consistent with the module: N=2, H=2, C=8, T=16.
    N, H, C, T = 2, 2, 8, 16
    key = jax.random.PRNGKey(0)
    qkv = jax.random.normal(key, (N, 3 * H * C, T), dtype=jnp.float32)
    ref = _reference(qkv, n_heads=H)

    # Default path: bf16 MXU operands (fast path on v6e/v7x), f32 softmax/accum.
    out = jax.block_until_ready(qkv_attention(qkv, n_heads=H))
    assert out.shape == (N, H * C, T), out.shape
    assert jnp.allclose(out, ref, atol=3e-2, rtol=3e-2), (
        float(jnp.max(jnp.abs(out - ref))))

    # Full-f32 MXU path for tight numerical parity.
    out_f32 = jax.block_until_ready(qkv_attention(qkv, n_heads=H, use_bf16_matmul=False))
    assert jnp.allclose(out_f32, ref, atol=2e-3, rtol=2e-3), (
        float(jnp.max(jnp.abs(out_f32 - ref))))

    # Tiled flash path: several KV tiles + ragged (masked) tail tiles on both axes.
    T2 = 640
    qkv2 = jax.random.normal(jax.random.PRNGKey(1), (N, 3 * H * C, T2),
                             dtype=jnp.float32)
    ref2 = _reference(qkv2, n_heads=H)

    out2 = jax.block_until_ready(
        qkv_attention(qkv2, n_heads=H, q_block=256, kv_block=512))
    assert out2.shape == (N, H * C, T2), out2.shape
    assert jnp.allclose(out2, ref2, atol=3e-2, rtol=3e-2), (
        float(jnp.max(jnp.abs(out2 - ref2))))

    out2_f32 = jax.block_until_ready(
        qkv_attention(qkv2, n_heads=H, q_block=256, kv_block=512,
                      use_bf16_matmul=False))
    assert jnp.allclose(out2_f32, ref2, atol=2e-3, rtol=2e-3), (
        float(jnp.max(jnp.abs(out2_f32 - ref2))))

    print("KERNEL_OK")
</pallas_src>

<mosaic_0001>
module attributes {stable_mosaic.version = 11 : i64} {
  func.func @_flash_qkv_kernel(%arg0: i32, %arg1: i32, %arg2: i32, %arg3: i32, %arg4: memref<1x1x2x8x16xf32, #tpu.memory_space<vmem>>, %arg5: memref<1x1x2x8x16xf32, #tpu.memory_space<vmem>>, %arg6: memref<1x1x2x8x16xf32, #tpu.memory_space<vmem>>, %arg7: memref<1x2x8x16xf32, #tpu.memory_space<vmem>>, %arg8: memref<2x8x16xbf16, #tpu.memory_space<vmem>>, %arg9: memref<2x1x16xf32, #tpu.memory_space<vmem>>, %arg10: memref<2x1x16xf32, #tpu.memory_space<vmem>>, %arg11: memref<2x8x16xf32, #tpu.memory_space<vmem>>) attributes {dimension_semantics = [#tpu.dimension_semantics<parallel>, #tpu.dimension_semantics<parallel>, #tpu.dimension_semantics<parallel>, #tpu.dimension_semantics<arbitrary>], iteration_bounds = array<i64: 2, 1, 1, 1>, scalar_prefetch = 0 : i64, scratch_operands = 4 : i64, tpu.core_type = #tpu.core_type<tc>, window_params = [{transform_indices = @transform_0, window_bounds = array<i64: 1, 1, 2, 8, 16>}, {transform_indices = @transform_1, window_bounds = array<i64: 1, 1, 2, 8, 16>}, {transform_indices = @transform_2, window_bounds = array<i64: 1, 1, 2, 8, 16>}, {transform_indices = @transform_3, window_bounds = array<i64: 1, 2, 8, 16>}]} {
    %c0_i32 = arith.constant 0 : i32
    %0 = arith.cmpi eq, %arg3, %c0_i32 : i32
    %1 = arith.extui %0 : i1 to i32
    %c0_i32_0 = arith.constant 0 : i32
    %2 = arith.cmpi ne, %1, %c0_i32_0 : i32
    scf.if %2 {
      %c0_36 = arith.constant 0 : index
      %c0_37 = arith.constant 0 : index
      %c0_38 = arith.constant 0 : index
      %c0_39 = arith.constant 0 : index
      %c0_40 = arith.constant 0 : index
      %37 = vector.load %arg4[%c0_36, %c0_37, %c0_38, %c0_39, %c0_40] : memref<1x1x2x8x16xf32, #tpu.memory_space<vmem>>, vector<1x1x2x8x16xf32>
      %38 = vector.shape_cast %37 : vector<1x1x2x8x16xf32> to vector<2x8x16xf32>
      %cst_41 = arith.constant 0.353553385 : f32
      %39 = vector.broadcast %cst_41 : f32 to vector<2x8x16xf32>
      %40 = arith.mulf %38, %39 : vector<2x8x16xf32>
      %41 = arith.truncf %40 : vector<2x8x16xf32> to vector<2x8x16xbf16>
      %c0_42 = arith.constant 0 : index
      %c0_43 = arith.constant 0 : index
      %c0_44 = arith.constant 0 : index
      %42 = vector.load %arg8[%c0_42, %c0_43, %c0_44] : memref<2x8x16xbf16, #tpu.memory_space<vmem>>, vector<2x8x16xbf16>
      tpu.vector_store %arg8[%c0_42, %c0_43, %c0_44], %41 {strides = array<i32>} : memref<2x8x16xbf16, #tpu.memory_space<vmem>>, vector<2x8x16xbf16>,
      %cst_45 = arith.constant 0xFF800000 : f32
      %43 = vector.broadcast %cst_45 : f32 to vector<2x1x16xf32>
      %c0_46 = arith.constant 0 : index
      %c0_47 = arith.constant 0 : index
      %c0_48 = arith.constant 0 : index
      %44 = vector.load %arg9[%c0_46, %c0_47, %c0_48] : memref<2x1x16xf32, #tpu.memory_space<vmem>>, vector<2x1x16xf32>
      tpu.vector_store %arg9[%c0_46, %c0_47, %c0_48], %43 {strides = array<i32>} : memref<2x1x16xf32, #tpu.memory_space<vmem>>, vector<2x1x16xf32>,
      %cst_49 = arith.constant 0.000000e+00 : f32
      %45 = vector.broadcast %cst_49 : f32 to vector<2x1x16xf32>
      %c0_50 = arith.constant 0 : index
      %c0_51 = arith.constant 0 : index
      %c0_52 = arith.constant 0 : index
      %46 = vector.load %arg10[%c0_50, %c0_51, %c0_52] : memref<2x1x16xf32, #tpu.memory_space<vmem>>, vector<2x1x16xf32>
      tpu.vector_store %arg10[%c0_50, %c0_51, %c0_52], %45 {strides = array<i32>} : memref<2x1x16xf32, #tpu.memory_space<vmem>>, vector<2x1x16xf32>,
      %cst_53 = arith.constant 0.000000e+00 : f32
      %47 = vector.broadcast %cst_53 : f32 to vector<2x8x16xf32>
      %c0_54 = arith.constant 0 : index
      %c0_55 = arith.constant 0 : index
      %c0_56 = arith.constant 0 : index
      %48 = vector.load %arg11[%c0_54, %c0_55, %c0_56] : memref<2x8x16xf32, #tpu.memory_space<vmem>>, vector<2x8x16xf32>
      tpu.vector_store %arg11[%c0_54, %c0_55, %c0_56], %47 {strides = array<i32>} : memref<2x8x16xf32, #tpu.memory_space<vmem>>, vector<2x8x16xf32>,
    } else {
    }
    %c0 = arith.constant 0 : index
    %c0_1 = arith.constant 0 : index
    %c0_2 = arith.constant 0 : index
    %3 = vector.load %arg8[%c0, %c0_1, %c0_2] : memref<2x8x16xbf16, #tpu.memory_space<vmem>>, vector<2x8x16xbf16>
    %c0_3 = arith.constant 0 : index
    %c0_4 = arith.constant 0 : index
    %c0_5 = arith.constant 0 : index
    %c0_6 = arith.constant 0 : index
    %c0_7 = arith.constant 0 : index
    %4 = vector.load %arg5[%c0_3, %c0_4, %c0_5, %c0_6, %c0_7] : memref<1x1x2x8x16xf32, #tpu.memory_space<vmem>>, vector<1x1x2x8x16xf32>
    %5 = vector.shape_cast %4 : vector<1x1x2x8x16xf32> to vector<2x8x16xf32>
    %6 = arith.truncf %5 : vector<2x8x16xf32> to vector<2x8x16xbf16>
    %c0_8 = arith.constant 0 : index
    %c0_9 = arith.constant 0 : index
    %c0_10 = arith.constant 0 : index
    %c0_11 = arith.constant 0 : index
    %c0_12 = arith.constant 0 : index
    %7 = vector.load %arg6[%c0_8, %c0_9, %c0_10, %c0_11, %c0_12] : memref<1x1x2x8x16xf32, #tpu.memory_space<vmem>>, vector<1x1x2x8x16xf32>
    %8 = vector.shape_cast %7 : vector<1x1x2x8x16xf32> to vector<2x8x16xf32>
    %cst = arith.constant dense<0.000000e+00> : vector<2x16x16xf32>
    %9 = tpu.matmul %6, %3, %cst {dimension_numbers = #tpu.dot_dimension_numbers<[1], [1], [2], [2], [0, 0, 0, 2, 1, 2], [0], [0]>} : vector<2x8x16xbf16>, vector<2x8x16xbf16>, vector<2x16x16xf32> -> vector<2x16x16xf32>
    %10 = arith.truncf %8 : vector<2x8x16xf32> to vector<2x8x16xbf16>
    %c0_13 = arith.constant 0 : index
    %c0_14 = arith.constant 0 : index
    %c0_15 = arith.constant 0 : index
    %11 = vector.load %arg9[%c0_13, %c0_14, %c0_15] : memref<2x1x16xf32, #tpu.memory_space<vmem>>, vector<2x1x16xf32>
    %cst_16 = arith.constant dense<0xFF800000> : vector<2x16xf32>
    %12 = vector.multi_reduction <maximumf>, %9, %cst_16 [1] : vector<2x16x16xf32> to vector<2x16xf32>
    %13 = vector.shape_cast %12 : vector<2x16xf32> to vector<2x1x16xf32>
    %14 = arith.maximumf %11, %13 : vector<2x1x16xf32>
    %15 = arith.subf %11, %14 : vector<2x1x16xf32>
    %16 = math.exp %15 : vector<2x1x16xf32>
    %17 = vector.broadcast %14 : vector<2x1x16xf32> to vector<2x16x16xf32>
    %18 = arith.subf %9, %17 : vector<2x16x16xf32>
    %19 = math.exp %18 : vector<2x16x16xf32>
    %c0_17 = arith.constant 0 : index
    %c0_18 = arith.constant 0 : index
    %c0_19 = arith.constant 0 : index
    %20 = vector.load %arg10[%c0_17, %c0_18, %c0_19] : memref<2x1x16xf32, #tpu.memory_space<vmem>>, vector<2x1x16xf32>
    %21 = arith.mulf %16, %20 : vector<2x1x16xf32>
    %cst_20 = arith.constant dense<0.000000e+00> : vector<2x16xf32>
    %22 = vector.multi_reduction <add>, %19, %cst_20 [1] : vector<2x16x16xf32> to vector<2x16xf32>
    %23 = vector.shape_cast %22 : vector<2x16xf32> to vector<2x1x16xf32>
    %24 = arith.addf %21, %23 : vector<2x1x16xf32>
    %c0_21 = arith.constant 0 : index
    %c0_22 = arith.constant 0 : index
    %c0_23 = arith.constant 0 : index
    %25 = vector.load %arg10[%c0_21, %c0_22, %c0_23] : memref<2x1x16xf32, #tpu.memory_space<vmem>>, vector<2x1x16xf32>
    tpu.vector_store %arg10[%c0_21, %c0_22, %c0_23], %24 {strides = array<i32>} : memref<2x1x16xf32, #tpu.memory_space<vmem>>, vector<2x1x16xf32>,
    %26 = arith.truncf %19 : vector<2x16x16xf32> to vector<2x16x16xbf16>
    %cst_24 = arith.constant dense<0.000000e+00> : vector<2x8x16xf32>
    %27 = tpu.matmul %10, %26, %cst_24 {dimension_numbers = #tpu.dot_dimension_numbers<[2], [1], [1], [2], [0, 0, 0, 1, 1, 2], [0], [0]>} : vector<2x8x16xbf16>, vector<2x16x16xbf16>, vector<2x8x16xf32> -> vector<2x8x16xf32>
    %c0_25 = arith.constant 0 : index
    %c0_26 = arith.constant 0 : index
    %c0_27 = arith.constant 0 : index
    %28 = vector.load %arg11[%c0_25, %c0_26, %c0_27] : memref<2x8x16xf32, #tpu.memory_space<vmem>>, vector<2x8x16xf32>
    %29 = vector.broadcast %16 : vector<2x1x16xf32> to vector<2x8x16xf32>
    %30 = arith.mulf %29, %28 : vector<2x8x16xf32>
    %31 = arith.addf %30, %27 : vector<2x8x16xf32>
    %c0_28 = arith.constant 0 : index
    %c0_29 = arith.constant 0 : index
    %c0_30 = arith.constant 0 : index
    %32 = vector.load %arg11[%c0_28, %c0_29, %c0_30] : memref<2x8x16xf32, #tpu.memory_space<vmem>>, vector<2x8x16xf32>
    tpu.vector_store %arg11[%c0_28, %c0_29, %c0_30], %31 {strides = array<i32>} : memref<2x8x16xf32, #tpu.memory_space<vmem>>, vector<2x8x16xf32>,
    %c0_31 = arith.constant 0 : index
    %c0_32 = arith.constant 0 : index
    %c0_33 = arith.constant 0 : index
    %33 = vector.load %arg9[%c0_31, %c0_32, %c0_33] : memref<2x1x16xf32, #tpu.memory_space<vmem>>, vector<2x1x16xf32>
    tpu.vector_store %arg9[%c0_31, %c0_32, %c0_33], %14 {strides = array<i32>} : memref<2x1x16xf32, #tpu.memory_space<vmem>>, vector<2x1x16xf32>,
    %c0_i32_34 = arith.constant 0 : i32
    %34 = arith.cmpi eq, %arg3, %c0_i32_34 : i32
    %35 = arith.extui %34 : i1 to i32
    %c0_i32_35 = arith.constant 0 : i32
    %36 = arith.cmpi ne, %35, %c0_i32_35 : i32
    scf.if %36 {
      %c0_36 = arith.constant 0 : index
      %c0_37 = arith.constant 0 : index
      %c0_38 = arith.constant 0 : index
      %37 = vector.load %arg10[%c0_36, %c0_37, %c0_38] : memref<2x1x16xf32, #tpu.memory_space<vmem>>, vector<2x1x16xf32>
      %38 = tpu.reciprocal %37 : vector<2x1x16xf32> -> vector<2x1x16xf32>
      %c0_39 = arith.constant 0 : index
      %c0_40 = arith.constant 0 : index
      %c0_41 = arith.constant 0 : index
      %39 = vector.load %arg11[%c0_39, %c0_40, %c0_41] : memref<2x8x16xf32, #tpu.memory_space<vmem>>, vector<2x8x16xf32>
      %40 = vector.broadcast %38 : vector<2x1x16xf32> to vector<2x8x16xf32>
      %41 = arith.mulf %39, %40 : vector<2x8x16xf32>
      %c0_42 = arith.constant 0 : index
      %c0_43 = arith.constant 0 : index
      %c0_44 = arith.constant 0 : index
      %c0_45 = arith.constant 0 : index
      %42 = vector.load %arg7[%c0_42, %c0_43, %c0_44, %c0_45] : memref<1x2x8x16xf32, #tpu.memory_space<vmem>>, vector<1x2x8x16xf32>
      %43 = vector.shape_cast %42 : vector<1x2x8x16xf32> to vector<2x8x16xf32>
      %44 = vector.shape_cast %41 : vector<2x8x16xf32> to vector<1x2x8x16xf32>
      tpu.vector_store %arg7[%c0_42, %c0_43, %c0_44, %c0_45], %44 {strides = array<i32>} : memref<1x2x8x16xf32, #tpu.memory_space<vmem>>, vector<1x2x8x16xf32>,
    } else {
    }
    return
  }
  func.func @transform_0(%arg0: i32, %arg1: i32, %arg2: i32, %arg3: i32) -> (i32, i32, i32, i32, i32) {
    %c0_i32 = arith.constant 0 : i32
    %c0_i32_0 = arith.constant 0 : i32
    %c0_i32_1 = arith.constant 0 : i32
    return %arg0, %c0_i32, %arg1, %c0_i32_0, %arg2 : i32, i32, i32, i32, i32
  }
  func.func @transform_1(%arg0: i32, %arg1: i32, %arg2: i32, %arg3: i32) -> (i32, i32, i32, i32, i32) {
    %c1_i32 = arith.constant 1 : i32
    %c0_i32 = arith.constant 0 : i32
    %c0_i32_0 = arith.constant 0 : i32
    return %arg0, %c1_i32, %arg1, %c0_i32, %arg3 : i32, i32, i32, i32, i32
  }
  func.func @transform_2(%arg0: i32, %arg1: i32, %arg2: i32, %arg3: i32) -> (i32, i32, i32, i32, i32) {
    %c2_i32 = arith.constant 2 : i32
    %c0_i32 = arith.constant 0 : i32
    %c0_i32_0 = arith.constant 0 : i32
    return %arg0, %c2_i32, %arg1, %c0_i32, %arg3 : i32, i32, i32, i32, i32
  }
  func.func @transform_3(%arg0: i32, %arg1: i32, %arg2: i32, %arg3: i32) -> (i32, i32, i32, i32) {
    %c0_i32 = arith.constant 0 : i32
    %c0_i32_0 = arith.constant 0 : i32
    return %arg0, %arg1, %c0_i32, %arg2 : i32, i32, i32, i32
  }
}

</mosaic_0001>

<llo_original>
// kernel: tpu_custom_call.1
$region0: #{tpu_custom_call.1}
  #allocation0 [shape = 'u32[]', space=smem, size = 0x4, offset = 0x4, fixed_abs, tag = 'smem constant byte address 0x4 - core index']
  #allocation1 [shape = 'u32[72,128]{1,0:T(1,128)}', space=vmem, size = 0x9000, scoped, tag = 'internal scratch']
  #allocation2 [shape = 'bf16[2,8,16]{2,1,0:T(8,128)(2,1)}', space=vmem, size = 0x1000, scoped, tag = 'scratch operand']
  #allocation3 [shape = 'f32[2,1,16]{2,1,0:T(1,128)}', space=vmem, size = 0x400, scoped, tag = 'scratch operand']
  #allocation4 [shape = 'f32[2,1,16]{2,1,0:T(1,128)}', space=vmem, size = 0x400, scoped, tag = 'scratch operand']
  #allocation5 [shape = 'f32[2,8,16]{2,1,0:T(8,128)}', space=vmem, size = 0x2000, scoped, tag = 'scratch operand']
  %s0 = inlined_call_operand.hbm [shape: f32[2,3,2,8,16], index: 0, kind: input, shape index: {}]
  %s1 = inlined_call_operand.hbm [shape: f32[2,3,2,8,16], index: 1, kind: input, shape index: {}]
  %s2 = inlined_call_operand.hbm [shape: f32[2,3,2,8,16], index: 2, kind: input, shape index: {}]
  %s3 = inlined_call_operand.hbm [shape: f32[2,2,8,16], index: 3, kind: output, shape index: {}]
  %s4 = sld [smem:[#allocation0]]
  $region65: #{tpu_custom_call.1} parent=0
    _
  %s6 = ssub.s32 1, %s4
  %s7 = scalar_select 0, %s6, %s4
  $region1: #{tpu_custom_call.1} parent=0
    #allocation6 [shape = 'u8[16384]{0}', space=vmem, size = 0x4000, scoped, tag = 'input window, operand 0']
    #allocation7 [shape = 's32[2]{0}', space=sflag, size = 0x8, scoped, tag = 'scoped memory for tpu_custom_call.1']
    #allocation8 [shape = 's32[2]{0}', space=sflag, size = 0x8, scoped, tag = 'scoped memory for tpu_custom_call.1']
    #allocation9 [shape = 'u8[16384]{0}', space=vmem, size = 0x4000, scoped, tag = 'input window, operand 1']
    #allocation10 [shape = 's32[2]{0}', space=sflag, size = 0x8, scoped, tag = 'scoped memory for tpu_custom_call.1']
    #allocation11 [shape = 'u8[16384]{0}', space=vmem, size = 0x4000, scoped, tag = 'input window, operand 2']
    #allocation12 [shape = 'u8[16384]{0}', space=vmem, size = 0x4000, scoped, tag = 'output window, operand 0']
    %8 = vsyncpa [#allocation7], 0
    %s9 = scalar_lea.sflag [#allocation7], 1
    %10 = vsyncpa %s9, 0
    %11 = vsyncpa [#allocation10], 0
    %s12 = scalar_lea.sflag [#allocation10], 1
    %13 = vsyncpa %s12, 0
    %14 = vsyncpa [#allocation8], 0
    %s15 = scalar_lea.sflag [#allocation8], 1
    %16 = vsyncpa %s15, 0
    loop: start=0, step=1, limit=4
    $region2: #{tpu_custom_call.1} parent=1 // loop_pre_header
      _
    $region3: #{tpu_custom_call.1} parent=1 // loop_header
      %s18 = sphi 0, %s22
      %p19 = scmp.ge.s32.totalorder %s18, 4
      %s25 = sphi 0, %s51
      %s26 = sphi 0, %s47
      %s27 = sphi 0, %s43
      %s28 = sphi 0, %s39
      %s29 = sphi 0, %s25
      %s30 = sphi 0, %s26
      %s31 = sphi 0, %s27
      %s32 = sphi 0, %s28
      %s33 = sphi 0, %s29
      %s34 = sphi 0, %s30
      %s35 = sphi 0, %s31
      %s36 = sphi 0, %s32
      %s58 = sphi 0, %s60
      %s61 = sphi 0, %s58
      %s62 = sphi 0, %s61
      %s78 = sphi 0, %s62
      %s88 = sphi 0, %s90
      %s91 = sphi 0, %s88
      %s92 = sphi 0, %s91
      %s108 = sphi 0, %s92
      %s118 = sphi 0, %s120
      %s121 = sphi 0, %s118
      %s122 = sphi 0, %s121
      %s138 = sphi 0, %s122
      %s148 = sphi 0, %s150
      %s151 = sphi 0, %s148
      %s152 = sphi 0, %s151
      %s168 = sphi 0, %s152
    $region4: #{tpu_custom_call.1} parent=1 // loop_header_branch
      %21 = sbr.rel (%p19) target = $region8
    $region5: #{tpu_custom_call.1} parent=1 // loop_body
      %s23 = ssub.s32 %s18, 1
      %s24 = ssub.s32 %s18, 2
      %s37 = sadd.s32 1, %s28
      %p38 = scmp.ge.s32.totalorder %s37, 1
      %s39 = scalar_select %p38, 0, %s37
      %s40 = sadd.s32 1, %s27
      %s41 = scalar_select %p38, %s40, %s27
      %p42 = scmp.ge.s32.totalorder %s41, 1
      %s43 = scalar_select %p42, 0, %s41
      %s44 = sadd.s32 1, %s26
      %s45 = scalar_select %p42, %s44, %s26
      %p46 = scmp.ge.s32.totalorder %s45, 1
      %s47 = scalar_select %p46, 0, %s45
      %s48 = sadd.s32 1, %s25
      %s49 = scalar_select %p46, %s48, %s25
      %p50 = scmp.ge.s32.totalorder %s49, 2
      %s51 = scalar_select %p50, 0, %s49
      %s52 = ssub.s32 %s25, %s51
      %s53 = ssub.s32 %s26, %s47
      %s54 = sor.u32 %s52, %s53
      %s55 = ssub.s32 %s27, %s43
      %s56 = sor.u32 %s54, %s55
      %p57 = scmp.eq.s32.totalorder %s56, 0
      %s59 = sadd.s32 %s58, 1
      %s60 = scalar_select %p57, %s58, %s59
      %p63 = pneg %p57
      %p64 = scmp.eq.s32.totalorder %s18, 1
      %p65 = por %p63, %p64
      %p66 = scmp.ne.s32.totalorder %s58, %s61
      %p67 = scmp.eq.s32.totalorder %s18, 0
      %p68 = por %p66, %p67
      %p69 = scmp.ne.s32.totalorder %s58, %s61
      %p70 = scmp.eq.s32.totalorder %s23, 1
      %p71 = por %p69, %p70
      %p72 = scmp.ne.s32.totalorder %s61, %s62
      %p73 = scmp.eq.s32.totalorder %s23, 0
      %p74 = por %p72, %p73
      %p75 = scmp.ne.s32.totalorder %s61, %s62
      %p76 = scmp.eq.s32.totalorder %s24, 1
      %p77 = por %p75, %p76
      %p79 = scmp.ne.s32.totalorder %s62, %s78
      %p80 = scmp.eq.s32.totalorder %s24, 0
      %p81 = por %p79, %p80
      %s82 = ssub.s32 %s25, %s51
      %s83 = ssub.s32 %s26, %s47
      %s84 = sor.u32 %s82, %s83
      %s85 = ssub.s32 %s28, %s39
      %s86 = sor.u32 %s84, %s85
      %p87 = scmp.eq.s32.totalorder %s86, 0
      %s89 = sadd.s32 %s88, 1
      %s90 = scalar_select %p87, %s88, %s89
      %p93 = pneg %p87
      %p94 = scmp.eq.s32.totalorder %s18, 1
      %p95 = por %p93, %p94
      %p96 = scmp.ne.s32.totalorder %s88, %s91
      %p97 = scmp.eq.s32.totalorder %s18, 0
      %p98 = por %p96, %p97
      %p99 = scmp.ne.s32.totalorder %s88, %s91
      %p100 = scmp.eq.s32.totalorder %s23, 1
      %p101 = por %p99, %p100
      %p102 = scmp.ne.s32.totalorder %s91, %s92
      %p103 = scmp.eq.s32.totalorder %s23, 0
      %p104 = por %p102, %p103
      %p105 = scmp.ne.s32.totalorder %s91, %s92
      %p106 = scmp.eq.s32.totalorder %s24, 1
      %p107 = por %p105, %p106
      %p109 = scmp.ne.s32.totalorder %s92, %s108
      %p110 = scmp.eq.s32.totalorder %s24, 0
      %p111 = por %p109, %p110
      %s112 = ssub.s32 %s25, %s51
      %s113 = ssub.s32 %s26, %s47
      %s114 = sor.u32 %s112, %s113
      %s115 = ssub.s32 %s28, %s39
      %s116 = sor.u32 %s114, %s115
      %p117 = scmp.eq.s32.totalorder %s116, 0
      %s119 = sadd.s32 %s118, 1
      %s120 = scalar_select %p117, %s118, %s119
      %p123 = pneg %p117
      %p124 = scmp.eq.s32.totalorder %s18, 1
      %p125 = por %p123, %p124
      %p126 = scmp.ne.s32.totalorder %s118, %s121
      %p127 = scmp.eq.s32.totalorder %s18, 0
      %p128 = por %p126, %p127
      %p129 = scmp.ne.s32.totalorder %s118, %s121
      %p130 = scmp.eq.s32.totalorder %s23, 1
      %p131 = por %p129, %p130
      %p132 = scmp.ne.s32.totalorder %s121, %s122
      %p133 = scmp.eq.s32.totalorder %s23, 0
      %p134 = por %p132, %p133
      %p135 = scmp.ne.s32.totalorder %s121, %s122
      %p136 = scmp.eq.s32.totalorder %s24, 1
      %p137 = por %p135, %p136
      %p139 = scmp.ne.s32.totalorder %s122, %s138
      %p140 = scmp.eq.s32.totalorder %s24, 0
      %p141 = por %p139, %p140
      %s142 = ssub.s32 %s25, %s51
      %s143 = ssub.s32 %s26, %s47
      %s144 = sor.u32 %s142, %s143
      %s145 = ssub.s32 %s27, %s43
      %s146 = sor.u32 %s144, %s145
      %p147 = scmp.eq.s32.totalorder %s146, 0
      %s149 = sadd.s32 %s148, 1
      %s150 = scalar_select %p147, %s148, %s149
      %p153 = pneg %p147
      %p154 = scmp.eq.s32.totalorder %s18, 1
      %p155 = por %p153, %p154
      %p156 = scmp.ne.s32.totalorder %s148, %s151
      %p157 = scmp.eq.s32.totalorder %s18, 0
      %p158 = por %p156, %p157
      %p159 = scmp.ne.s32.totalorder %s148, %s151
      %p160 = scmp.eq.s32.totalorder %s23, 1
      %p161 = por %p159, %p160
      %p162 = scmp.ne.s32.totalorder %s151, %s152
      %p163 = scmp.eq.s32.totalorder %s23, 0
      %p164 = por %p162, %p163
      %p165 = scmp.ne.s32.totalorder %s151, %s152
      %p166 = scmp.eq.s32.totalorder %s24, 1
      %p167 = por %p165, %p166
      %p169 = scmp.ne.s32.totalorder %s152, %s168
      %p170 = scmp.eq.s32.totalorder %s24, 0
      %p171 = por %p169, %p170
      %p172 = scmp.le.s32.totalorder 1, %s18
      %p173 = scmp.lt.s32.totalorder %s18, 3
      %p174 = pnand %p172, %p173
      %p175 = pneg %p174
      // Predicated region
      $region9: #{tpu_custom_call.1} parent=5 // pred_check
        _
      $region10: #{tpu_custom_call.1} parent=5 // pred_check_branch
        %177 = sbr.rel (%p174) target = $region12
      $region11: #{tpu_custom_call.1} parent=5 // pred_region
        %s178 = ssub.s32 %s18, 1
      $region12: #{tpu_custom_call.1} parent=5 // pred_fallthru
        _
      %p179 = scmp.lt.s32.totalorder %s18, 2
      // Predicated region
      $region13: #{tpu_custom_call.1} parent=5 // pred_check
        %p180 = pneg %p179
      $region14: #{tpu_custom_call.1} parent=5 // pred_check_branch
        %182 = sbr.rel (%p180) target = $region16
      $region15: #{tpu_custom_call.1} parent=5 // pred_region
        // Predicated region
        $region17: #{tpu_custom_call.1} parent=15 // pred_check
          %p183 = pneg %p68
        $region18: #{tpu_custom_call.1} parent=15 // pred_check_branch
          %185 = sbr.rel (%p183) target = $region20
        $region19: #{tpu_custom_call.1} parent=15 // pred_region
          %s186 = sand.u32 %s58, 1
          %s187 = scalar_lea.sflag [#allocation7], %s186
          %s188 = sand.u32 %s58, 1
          %s189 = smul.addr %s188, 16
          %s190 = scalar_lea.vmem [#allocation6], %s189
          %s191 = smul.u32 2, %s26
          %193 = vsyncadd %s187, 0
          %s194 = sadd.s32 %s27, %s191
          %s195 = smul.addr %s25, 6
          %s196 = sadd.s32 %s194, %s195
          %s197 = smul.addr %s196, 8
          %s198 = scalar_lea.hbm %s0, %s197
          %s199 = sshll.u32 %s198, 4
          %s200 = int_to_ptr.hbm [resolvable:$true] %s199
          %s201 = sshll.u32 %s190, 4
          %s202 = int_to_ptr.vmem [resolvable:$true] %s201
          %207 = dma.hbm_to_vmem [thread:$0]  %s200, 256, %s202, %s187, 128, 128, 8
        $region20: #{tpu_custom_call.1} parent=15 // pred_fallthru
          _
        // Predicated region
        $region21: #{tpu_custom_call.1} parent=15 // pred_check
          %p208 = pneg %p98
        $region22: #{tpu_custom_call.1} parent=15 // pred_check_branch
          %210 = sbr.rel (%p208) target = $region24
        $region23: #{tpu_custom_call.1} parent=15 // pred_region
          %s211 = sand.u32 %s18, 1
          %s212 = scalar_lea.sflag [#allocation10], %s211
          %s213 = sand.u32 %s88, 1
          %s214 = smul.addr %s213, 16
          %s215 = scalar_lea.vmem [#allocation9], %s214
          %s216 = smul.u32 2, %s26
          %218 = vsyncadd %s212, 0
          %s219 = sadd.s32 %s28, %s216
          %s220 = sadd.s32 %s219, 2
          %s221 = smul.addr %s25, 6
          %s222 = sadd.s32 %s220, %s221
          %s223 = smul.addr %s222, 8
          %s224 = scalar_lea.hbm %s1, %s223
          %s225 = sshll.u32 %s224, 4
          %s226 = int_to_ptr.hbm [resolvable:$true] %s225
          %s227 = sshll.u32 %s215, 4
          %s228 = int_to_ptr.vmem [resolvable:$true] %s227
          %233 = dma.hbm_to_vmem [thread:$0]  %s226, 256, %s228, %s212, 128, 128, 8
        $region24: #{tpu_custom_call.1} parent=15 // pred_fallthru
          _
        // Predicated region
        $region25: #{tpu_custom_call.1} parent=15 // pred_check
          %p234 = pneg %p128
        $region26: #{tpu_custom_call.1} parent=15 // pred_check_branch
          %236 = sbr.rel (%p234) target = $region28
        $region27: #{tpu_custom_call.1} parent=15 // pred_region
          %s237 = sand.u32 %s18, 1
          %s238 = scalar_lea.sflag [#allocation10], %s237
          %s239 = sand.u32 %s118, 1
          %s240 = smul.addr %s239, 16
          %s241 = scalar_lea.vmem [#allocation11], %s240
          %s242 = smul.u32 2, %s26
          %244 = vsyncadd %s238, 0
          %s245 = sadd.s32 %s28, %s242
          %s246 = sadd.s32 %s245, 4
          %s247 = smul.addr %s25, 6
          %s248 = sadd.s32 %s246, %s247
          %s249 = smul.addr %s248, 8
          %s250 = scalar_lea.hbm %s2, %s249
          %s251 = sshll.u32 %s250, 4
          %s252 = int_to_ptr.hbm [resolvable:$true] %s251
          %s253 = sshll.u32 %s241, 4
          %s254 = int_to_ptr.vmem [resolvable:$true] %s253
          %259 = dma.hbm_to_vmem [thread:$0]  %s252, 256, %s254, %s238, 128, 128, 8
        $region28: #{tpu_custom_call.1} parent=15 // pred_fallthru
          _
      $region16: #{tpu_custom_call.1} parent=5 // pred_fallthru
        _
      %p260 = scmp.le.s32.totalorder 1, %s18
      %p261 = scmp.lt.s32.totalorder %s18, 3
      %p262 = pnand %p260, %p261
      %p263 = pneg %p262
      // Predicated region
      $region29: #{tpu_custom_call.1} parent=5 // pred_check
        _
      $region30: #{tpu_custom_call.1} parent=5 // pred_check_branch
        %265 = sbr.rel (%p262) target = $region32
      $region31: #{tpu_custom_call.1} parent=5 // pred_region
        %s266 = ssub.s32 %s18, 1
        %s267 = sand.u32 %s61, 1
        %s268 = scalar_lea.sflag [#allocation7], %s267
        %s269 = sand.u32 %s61, 1
        %s270 = smul.addr %s269, 16
        %s271 = scalar_lea.vmem [#allocation6], %s270
        // Predicated region
        $region33: #{tpu_custom_call.1} parent=31 // pred_check
          %p272 = pneg %p74
        $region34: #{tpu_custom_call.1} parent=31 // pred_check_branch
          %274 = sbr.rel (%p272) target = $region36
        $region35: #{tpu_custom_call.1} parent=31 // pred_region
          %276 = dma.done %s268, 256
        $region36: #{tpu_custom_call.1} parent=31 // pred_fallthru
          _
        %s277 = sand.u32 %s23, 1
        %s278 = scalar_lea.sflag [#allocation10], %s277
        %s279 = sand.u32 %s91, 1
        %s280 = smul.addr %s279, 16
        %s281 = scalar_lea.vmem [#allocation9], %s280
        // Predicated region
        $region37: #{tpu_custom_call.1} parent=31 // pred_check
          %p282 = pneg %p104
        $region38: #{tpu_custom_call.1} parent=31 // pred_check_branch
          %284 = sbr.rel (%p282) target = $region40
        $region39: #{tpu_custom_call.1} parent=31 // pred_region
          %286 = dma.done %s278, 256
        $region40: #{tpu_custom_call.1} parent=31 // pred_fallthru
          _
        %s287 = sand.u32 %s23, 1
        %s288 = scalar_lea.sflag [#allocation10], %s287
        %s289 = sand.u32 %s121, 1
        %s290 = smul.addr %s289, 16
        %s291 = scalar_lea.vmem [#allocation11], %s290
        // Predicated region
        $region41: #{tpu_custom_call.1} parent=31 // pred_check
          %p292 = pneg %p134
        $region42: #{tpu_custom_call.1} parent=31 // pred_check_branch
          %294 = sbr.rel (%p292) target = $region44
        $region43: #{tpu_custom_call.1} parent=31 // pred_region
          %296 = dma.done %s288, 256
        $region44: #{tpu_custom_call.1} parent=31 // pred_fallthru
          _
        %s297 = sand.u32 %s61, 1
        %s298 = scalar_lea.sflag [#allocation7], %s297
        %s299 = sand.u32 %s61, 1
        %s300 = smul.addr %s299, 16
        %s301 = scalar_lea.vmem [#allocation6], %s300
        %p302 = pneg %p74
        %p303 = pneg %p71
        %s304 = sand.u32 %s23, 1
        %s305 = scalar_lea.sflag [#allocation10], %s304
        %s306 = sand.u32 %s91, 1
        %s307 = smul.addr %s306, 16
        %s308 = scalar_lea.vmem [#allocation9], %s307
        %p309 = pneg %p104
        %p310 = pneg %p101
        %s311 = sand.u32 %s23, 1
        %s312 = scalar_lea.sflag [#allocation10], %s311
        %s313 = sand.u32 %s121, 1
        %s314 = smul.addr %s313, 16
        %s315 = scalar_lea.vmem [#allocation11], %s314
        %p316 = pneg %p134
        %p317 = pneg %p131
        %p318 = pneg %p164
        %p319 = pneg %p161
        %s320 = sand.u32 %s151, 1
        %s321 = scalar_lea.sflag [#allocation8], %s320
        %s322 = sand.u32 %s151, 1
        %s323 = smul.addr %s322, 16
        %s324 = scalar_lea.vmem [#allocation12], %s323
        %s325 = smul.u32 2, %s30
        %s326 = smul.u32 2, %s30
        %s327 = smul.u32 2, %s30
        %s328 = smul.u32 2, %s30
        %p330 = scmp.eq.s32.totalorder %s32, 0
        // Predicated region
        $region45: #{tpu_custom_call.1} parent=31 // pred_check
          %p331 = pneg %p330
        $region46: #{tpu_custom_call.1} parent=31 // pred_check_branch
          %333 = sbr.rel (%p331) target = $region48
        $region47: #{tpu_custom_call.1} parent=31 // pred_region
          %v334 = vld [vmem:[%s271] sm:$0xff]
          %v335 = vld [vmem:[%s271 + $0x8] sm:$0xff]
          %v336 = vmul.f32 %v334, 0.35355338
          %v337 = vmul.f32 %v335, 0.35355338
          %v338 = vpack.c.bf16 %v336, %v336
          %v339 = vpack.c.bf16 %v337, %v337
          %vm340 = vcmask 125952
          %341 = vst.msk [vmem:[#allocation2] sm:$0xf] %vm340, %v338
          %342 = vst.msk [vmem:[#allocation2 + $0x4] sm:$0xf] %vm340, %v339
          %vm343 = vcmask 122880
          %344 = vst.msk [vmem:[#allocation3] sm:$0x1] %vm343, -inf
          %345 = vst.msk [vmem:[#allocation3 + $0x1] sm:$0x1] %vm343, -inf
          %346 = vst.msk [vmem:[#allocation4] sm:$0x1] %vm343, 0.0
          %347 = vst.msk [vmem:[#allocation4 + $0x1] sm:$0x1] %vm343, 0.0
          %vm348 = vcmask 130048
          %349 = vst.msk [vmem:[#allocation5] sm:$0xff] %vm348, 0.0
          %350 = vst.msk [vmem:[#allocation5 + $0x8] sm:$0xff] %vm348, 0.0
        $region48: #{tpu_custom_call.1} parent=31 // pred_fallthru
          _
        %v351 = vld [vmem:[#allocation2] sm:$0xf]
        %v352 = vld [vmem:[#allocation2 + $0x4] sm:$0xf]
        %v353 = vld [vmem:[%s281] sm:$0xff]
        %v354 = vld [vmem:[%s281 + $0x8] sm:$0xff]
        %v355 = vpack.c.bf16 %v353, %v353
        %v356 = vpack.c.bf16 %v354, %v354
        %v357 = vld [vmem:[%s291] sm:$0xff]
        %v358 = vld [vmem:[%s291 + $0x8] sm:$0xff]
        %359 = vxpose.xlu0.c.b16.start [1/8] %v355, 128
        %360 = vxpose.xlu0.c.b16.cont [2/8] 0, 128
        %361 = vxpose.xlu0.c.b16.cont [3/8] 0, 128
        %362 = vxpose.xlu0.c.b16.cont [4/8] 0, 128
        %363 = vxpose.xlu0.c.b16.cont [5/8] 0, 128
        %364 = vxpose.xlu0.c.b16.cont [6/8] 0, 128
        %365 = vxpose.xlu0.c.b16.cont [7/8] 0, 128
        %366 = vxpose.xlu0.c.b16.end [8/8] 0, 128
        %v367 = vpop.trf.xlu0
        %v368 = vpop.trf.xlu0
        %v369 = vpop.trf.xlu0
        %v370 = vpop.trf.xlu0
        %v371 = vpop.trf.xlu0
        %v372 = vpop.trf.xlu0
        %v373 = vpop.trf.xlu0
        %v374 = vpop.trf.xlu0
        %vm375 = vcmask 64512
        %v377 = vsel %vm375, %v367, 0
        %vm379 = vcmask 1043456
        %v381 = vsel %vm379, %v351, 0
        %383 = vmatpush.bf16.msra.mxu0 0
        %384 = vmatpush.bf16.msra.mxu0 0
        %385 = vmatpush.bf16.msra.mxu0 0
        %386 = vmatpush.bf16.msra.mxu0 0
        %387 = vmatpush.bf16.msra.mxu0 0
        %388 = vmatpush.bf16.msra.mxu0 0
        %389 = vmatpush.bf16.msra.mxu0 0
        %390 = vmatpush.bf16.msra.mxu0 %v381
        %391 = vmatmul.bf16.gmra.mxu0 %v377
        %v392 = vpop.f32.mrf.mxu0
        %v393 = vadd.f32 0.0, %v392
        %v394 = vpop.f32.mrf.mxu0
        %v395 = vadd.f32 0.0, %v394
        %396 = vdwg.mxu0
        %397 = vxpose.xlu0.c.b16.start [1/8] %v356, 128
        %398 = vxpose.xlu0.c.b16.cont [2/8] 0, 128
        %399 = vxpose.xlu0.c.b16.cont [3/8] 0, 128
        %400 = vxpose.xlu0.c.b16.cont [4/8] 0, 128
        %401 = vxpose.xlu0.c.b16.cont [5/8] 0, 128
        %402 = vxpose.xlu0.c.b16.cont [6/8] 0, 128
        %403 = vxpose.xlu0.c.b16.cont [7/8] 0, 128
        %404 = vxpose.xlu0.c.b16.end [8/8] 0, 128
        %v405 = vpop.trf.xlu0
        %v406 = vpop.trf.xlu0
        %v407 = vpop.trf.xlu0
        %v408 = vpop.trf.xlu0
        %v409 = vpop.trf.xlu0
        %v410 = vpop.trf.xlu0
        %v411 = vpop.trf.xlu0
        %v412 = vpop.trf.xlu0
        %v414 = vsel %vm375, %v405, 0
        %v417 = vsel %vm379, %v352, 0
        %419 = vmatpush.bf16.msra.mxu0 0
        %420 = vmatpush.bf16.msra.mxu0 0
        %421 = vmatpush.bf16.msra.mxu0 0
        %422 = vmatpush.bf16.msra.mxu0 0
        %423 = vmatpush.bf16.msra.mxu0 0
        %424 = vmatpush.bf16.msra.mxu0 0
        %425 = vmatpush.bf16.msra.mxu0 0
        %426 = vmatpush.bf16.msra.mxu0 %v417
        %427 = vmatmul.bf16.gmra.mxu0 %v414
        %v428 = vpop.f32.mrf.mxu0
        %v429 = vadd.f32 0.0, %v428
        %v430 = vpop.f32.mrf.mxu0
        %v431 = vadd.f32 0.0, %v430
        %432 = vdwg.mxu0
        %v433 = vpack.c.bf16 %v357, %v357
        %v434 = vpack.c.bf16 %v358, %v358
        %v435 = vld [vmem:[#allocation3] sm:$0x1]
        %v436 = vld [vmem:[#allocation3 + $0x1] sm:$0x1]
        %vm437 = vcmask 130048
        %v438 = vsel %vm437, %v393, -inf
        %v439 = vsel %vm437, %v395, -inf
        %v440 = vmax.f32 %v438, %v439
        %v441 = vrot.slane %v440, 4
        %v442 = vmax.f32 %v440, %v441
        %v443 = vrot.slane %v442, 2
        %v444 = vmax.f32 %v442, %v443
        %v445 = vrot.slane %v444, 1
        %v446 = vmax.f32 %v444, %v445
        %v447 = vsel %vm437, %v429, -inf
        %v448 = vsel %vm437, %v431, -inf
        %v449 = vmax.f32 %v447, %v448
        %v450 = vrot.slane %v449, 4
        %v451 = vmax.f32 %v449, %v450
        %v452 = vrot.slane %v451, 2
        %v453 = vmax.f32 %v451, %v452
        %v454 = vrot.slane %v453, 1
        %v455 = vmax.f32 %v453, %v454
        %v456 = vmax.f32 %v435, %v446
        %v457 = vmax.f32 %v436, %v455
        %v458 = vsub.f32 %v435, %v456
        %v459 = vsub.f32 %v436, %v457
        %v460 = vmul.f32 %v458, 1.442695
        %v461 = vpow.pop %v460
        %v462 = vmul.f32 %v459, 1.442695
        %v463 = vpow.pop %v462
        %v466 = vperm.slane %v456, 0
        %v467 = vperm.slane %v457, 0
        %v470 = vsub.f32 %v393, %v466
        %v471 = vsub.f32 %v395, %v466
        %v472 = vsub.f32 %v429, %v467
        %v473 = vsub.f32 %v431, %v467
        %v474 = vmul.f32 %v470, 1.442695
        %v475 = vpow.pop %v474
        %v476 = vmul.f32 %v471, 1.442695
        %v477 = vpow.pop %v476
        %v478 = vmul.f32 %v472, 1.442695
        %v479 = vpow.pop %v478
        %v480 = vmul.f32 %v473, 1.442695
        %v481 = vpow.pop %v480
        %v482 = vld [vmem:[#allocation4] sm:$0x1]
        %v483 = vld [vmem:[#allocation4 + $0x1] sm:$0x1]
        %v484 = vmul.f32 %v461, %v482
        %v485 = vmul.f32 %v463, %v483
        %v486 = vsel %vm437, %v475, 0.0
        %v487 = vsel %vm437, %v477, 0.0
        %v488 = vadd.f32 %v486, %v487
        %v489 = vrot.slane %v488, 4
        %v490 = vadd.f32 %v488, %v489
        %v491 = vrot.slane %v490, 2
        %v492 = vadd.f32 %v490, %v491
        %v493 = vrot.slane %v492, 1
        %v494 = vadd.f32 %v492, %v493
        %v495 = vsel %vm437, %v479, 0.0
        %v496 = vsel %vm437, %v481, 0.0
        %v497 = vadd.f32 %v495, %v496
        %v498 = vrot.slane %v497, 4
        %v499 = vadd.f32 %v497, %v498
        %v500 = vrot.slane %v499, 2
        %v501 = vadd.f32 %v499, %v500
        %v502 = vrot.slane %v501, 1
        %v503 = vadd.f32 %v501, %v502
        %v504 = vadd.f32 %v484, %v494
        %v505 = vadd.f32 %v485, %v503
        %vm506 = vcmask 122880
        %507 = vst.msk [vmem:[#allocation4] sm:$0x1] %vm506, %v504
        %508 = vst.msk [vmem:[#allocation4 + $0x1] sm:$0x1] %vm506, %v505
        %v509 = vpack.c.bf16 %v475, %v475
        %v510 = vpack.c.bf16 %v477, %v477
        %v511 = vpack.c.bf16 %v479, %v479
        %v512 = vpack.c.bf16 %v481, %v481
        %v515 = vunpack.c.l.b16 %v509
        %v516 = vunpack.c.l.b16 %v510
        %v517 = vpack.c.b16 %v516, %v515
        %v520 = vsel %vm437, %v433, 0
        %522 = vmatpush.bf16.msra.mxu0 0
        %523 = vmatpush.bf16.msra.mxu0 0
        %524 = vmatpush.bf16.msra.mxu0 0
        %525 = vmatpush.bf16.msra.mxu0 0
        %526 = vmatpush.bf16.msra.mxu0 0
        %527 = vmatpush.bf16.msra.mxu0 0
        %528 = vmatpush.bf16.msra.mxu0 0
        %529 = vmatpush.bf16.msra.mxu0 %v517
        %530 = vmatmul.bf16.gmra.mxu0 %v520
        %v531 = vpop.f32.mrf.mxu0
        %v532 = vadd.f32 0.0, %v531
        %v533 = vpop.f32.mrf.mxu0
        %534 = vdwg.mxu0
        %v537 = vunpack.c.l.b16 %v511
        %v538 = vunpack.c.l.b16 %v512
        %v539 = vpack.c.b16 %v538, %v537
        %v542 = vsel %vm437, %v434, 0
        %544 = vmatpush.bf16.msra.mxu0 0
        %545 = vmatpush.bf16.msra.mxu0 0
        %546 = vmatpush.bf16.msra.mxu0 0
        %547 = vmatpush.bf16.msra.mxu0 0
        %548 = vmatpush.bf16.msra.mxu0 0
        %549 = vmatpush.bf16.msra.mxu0 0
        %550 = vmatpush.bf16.msra.mxu0 0
        %551 = vmatpush.bf16.msra.mxu0 %v539
        %552 = vmatmul.bf16.gmra.mxu0 %v542
        %v553 = vpop.f32.mrf.mxu0
        %v554 = vadd.f32 0.0, %v553
        %v555 = vpop.f32.mrf.mxu0
        %556 = vdwg.mxu0
        %v557 = vld [vmem:[#allocation5] sm:$0xff]
        %v558 = vld [vmem:[#allocation5 + $0x8] sm:$0xff]
        %v561 = vperm.slane %v461, 0
        %v562 = vperm.slane %v463, 0
        %v565 = vmul.f32 %v561, %v557
        %v566 = vmul.f32 %v562, %v558
        %v567 = vadd.f32 %v565, %v532
        %v568 = vadd.f32 %v566, %v554
        %569 = vst.msk [vmem:[#allocation5] sm:$0xff] %vm437, %v567
        %570 = vst.msk [vmem:[#allocation5 + $0x8] sm:$0xff] %vm437, %v568
        %571 = vst.msk [vmem:[#allocation3] sm:$0x1] %vm506, %v456
        %572 = vst.msk [vmem:[#allocation3 + $0x1] sm:$0x1] %vm506, %v457
        // Predicated region
        $region49: #{tpu_custom_call.1} parent=31 // pred_check
          %p573 = pneg %p330
        $region50: #{tpu_custom_call.1} parent=31 // pred_check_branch
          %575 = sbr.rel (%p573) target = $region52
        $region51: #{tpu_custom_call.1} parent=31 // pred_region
          %v576 = vld [vmem:[#allocation4] sm:$0x1]
          %v577 = vld [vmem:[#allocation4 + $0x1] sm:$0x1]
          %v578 = vrcp.pop %v576
          %v579 = vmul.f32 %v576, %v578
          %v580 = vsub.f32 1.0, %v579
          %v581 = vmul.f32 %v578, %v580
          %v582 = vadd.f32 %v578, %v581
          %vm583 = vweird.f32 %v576
          %vm584 = vweird.f32 %v578
          %vm585 = vmor %vm583, %vm584
          %v586 = vsel %vm585, %v578, %v582
          %v587 = vand.u32 2147483647, %v576
          %vm588 = vcmp.eq.f32.partialorder %v587, 8.507059e+37
          %v589 = vand.u32 %v576, 2147483648
          %v590 = vor.u32 1.1754944e-38, %v589
          %v591 = vsel %vm588, %v590, %v586
          %v592 = vrcp.pop %v577
          %v593 = vmul.f32 %v577, %v592
          %v594 = vsub.f32 1.0, %v593
          %v595 = vmul.f32 %v592, %v594
          %v596 = vadd.f32 %v592, %v595
          %vm597 = vweird.f32 %v577
          %vm598 = vweird.f32 %v592
          %vm599 = vmor %vm597, %vm598
          %v600 = vsel %vm599, %v592, %v596
          %v601 = vand.u32 2147483647, %v577
          %vm602 = vcmp.eq.f32.partialorder %v601, 8.507059e+37
          %v603 = vand.u32 %v577, 2147483648
          %v604 = vor.u32 1.1754944e-38, %v603
          %v605 = vsel %vm602, %v604, %v600
          %v606 = vld [vmem:[#allocation5] sm:$0xff]
          %v607 = vld [vmem:[#allocation5 + $0x8] sm:$0xff]
          %v610 = vperm.slane %v591, 0
          %v611 = vperm.slane %v605, 0
          %v614 = vmul.f32 %v606, %v610
          %v615 = vmul.f32 %v607, %v611
          %616 = vst.msk [vmem:[%s324] sm:$0xff] %vm437, %v614
          %617 = vst.msk [vmem:[%s324 + $0x8] sm:$0xff] %vm437, %v615
        $region52: #{tpu_custom_call.1} parent=31 // pred_fallthru
          _
        %s618 = sand.u32 %s151, 1
        %s619 = scalar_lea.sflag [#allocation8], %s618
        %s620 = sand.u32 %s151, 1
        %s621 = smul.addr %s620, 16
        %s622 = scalar_lea.vmem [#allocation12], %s621
        // Predicated region
        $region53: #{tpu_custom_call.1} parent=31 // pred_check
          %p623 = pneg %p161
        $region54: #{tpu_custom_call.1} parent=31 // pred_check_branch
          %625 = sbr.rel (%p623) target = $region56
        $region55: #{tpu_custom_call.1} parent=31 // pred_region
          %s626 = smul.u32 2, %s30
          %628 = vsyncadd %s619, 0
          %s629 = sadd.s32 %s31, %s626
          %s630 = smul.addr %s29, 2
          %s631 = sadd.s32 %s629, %s630
          %s632 = smul.addr %s631, 8
          %s633 = scalar_lea.hbm %s3, %s632
          %s634 = sshll.u32 %s622, 4
          %s635 = int_to_ptr.vmem [resolvable:$true] %s634
          %s636 = sshll.u32 %s633, 4
          %s637 = int_to_ptr.hbm [resolvable:$true] %s636
          %642 = dma.vmem_to_hbm [thread:$0]  %s635, 256, %s637, %s619, 128, 128, 8
        $region56: #{tpu_custom_call.1} parent=31 // pred_fallthru
          _
      $region32: #{tpu_custom_call.1} parent=5 // pred_fallthru
        _
      %p643 = scmp.le.s32.totalorder 2, %s18
      // Predicated region
      $region57: #{tpu_custom_call.1} parent=5 // pred_check
        %p644 = pneg %p643
      $region58: #{tpu_custom_call.1} parent=5 // pred_check_branch
        %646 = sbr.rel (%p644) target = $region60
      $region59: #{tpu_custom_call.1} parent=5 // pred_region
        %s647 = ssub.s32 %s18, 2
        // Predicated region
        $region61: #{tpu_custom_call.1} parent=59 // pred_check
          %p648 = pneg %p167
        $region62: #{tpu_custom_call.1} parent=59 // pred_check_branch
          %650 = sbr.rel (%p648) target = $region64
        $region63: #{tpu_custom_call.1} parent=59 // pred_region
          %s651 = sand.u32 %s152, 1
          %s652 = scalar_lea.sflag [#allocation8], %s651
          %s653 = sand.u32 %s152, 1
          %s654 = smul.addr %s653, 16
          %s655 = scalar_lea.vmem [#allocation12], %s654
          %657 = dma.done %s652, 256
        $region64: #{tpu_custom_call.1} parent=59 // pred_fallthru
          _
      $region60: #{tpu_custom_call.1} parent=5 // pred_fallthru
        _
    $region6: #{tpu_custom_call.1} parent=1 // loop_footer
      %s22 = sadd.s32 1, %s18
    $region7: #{tpu_custom_call.1} parent=1 // loop_footer_branch
      %17 = sbr.rel target = $region3
    $region8: #{tpu_custom_call.1} parent=1 // loop_exit
      _
    %658 = vsyncpa [#allocation7], 1
    %s659 = scalar_lea.sflag [#allocation7], 1
    %660 = vsyncpa %s659, 1
    %661 = vsyncpa [#allocation10], 1
    %s662 = scalar_lea.sflag [#allocation10], 1
    %663 = vsyncpa %s662, 1
    %664 = vsyncpa [#allocation8], 1
    %s665 = scalar_lea.sflag [#allocation8], 1
    %666 = vsyncpa %s665, 1

</llo_original>
